<compile_context>
chip_gen: v7x
topology: tpu7x:2x2x1
jax: 0.10.0
libtpu: 0.0.40
codegen_flags: <defaults>
</compile_context>

<pallas_src>
import functools
import math

import jax
import jax.numpy as jnp
from jax.experimental import pallas as pl
from jax.experimental.pallas import tpu as pltpu


# ---------------------------------------------------------------------------
# Kernel
# ---------------------------------------------------------------------------
def _vae_kernel(
    x_ref, eps_ref,
    w1_ref, whead_ref, wd1_ref, wd2_ref, wd3_ref,
    bias_ref,
    out_ref,
    *, hidden_size, latent_size, output_size,
):
    f32 = jnp.float32
    wdt = w1_ref.dtype  # matmul-operand dtype (bf16); accumulation stays f32

    def silu(v):
        # sigmoid = 1 / (1 + exp(-v)): exp + approx reciprocal both ride the
        # EUP slot, keeping the VALU slot free.
        return v * pl.reciprocal(1.0 + jnp.exp(-v), approx=True)

    # Packed bias / bound rows (static slices of the resident VMEM tile).
    b1     = bias_ref[0:1, :hidden_size]
    bhead  = bias_ref[1:2, :2 * latent_size]
    bd1    = bias_ref[2:3, :hidden_size]
    bd2    = bias_ref[3:4, :hidden_size]
    bd3    = bias_ref[4:5, :output_size]
    min_lv = bias_ref[5:6, :latent_size]
    max_lv = bias_ref[6:7, :latent_size]

    # ---- encoder layer 1 + SiLU ----
    h = jnp.dot(x_ref[...], w1_ref[...], preferred_element_type=f32) + b1
    h = silu(h)

    # ---- fused (encoder layer 2  ∘  mu/logvar heads): single matmul ----
    head = jnp.dot(h.astype(wdt), whead_ref[...], preferred_element_type=f32) + bhead
    mu = head[:, :latent_size]
    logvar = head[:, latent_size:]          # returned unclamped, as in torch forward()

    # ---- reparameterize (clamp feeds only std, matching the module) ----
    lv = jnp.minimum(jnp.maximum(logvar, min_lv), max_lv)
    std = jnp.exp(0.5 * lv)
    z = mu + eps_ref[...].astype(f32) * std

    # ---- decoder: Linear -> SiLU -> Linear -> SiLU -> Linear ----
    d = silu(jnp.dot(z.astype(wdt), wd1_ref[...], preferred_element_type=f32) + bd1)
    d = silu(jnp.dot(d.astype(wdt), wd2_ref[...], preferred_element_type=f32) + bd2)
    d = jnp.dot(d.astype(wdt), wd3_ref[...], preferred_element_type=f32) + bd3

    # ---- packed output slab: direct static sub-slice stores (no concat) ----
    out_ref[:, :output_size] = d.astype(out_ref.dtype)
    out_ref[:, output_size:output_size + latent_size] = mu.astype(out_ref.dtype)
    out_ref[:, output_size + latent_size:] = logvar.astype(out_ref.dtype)


# ---------------------------------------------------------------------------
# Wrapper
# ---------------------------------------------------------------------------
def _tensorcores_per_chip() -> int:
    """Heuristic: 2 TensorCores on v4/v5p (megacore) and v7x, else 1."""
    try:
        kind = jax.devices()[0].device_kind.lower()
    except Exception:
        return 1
    if "lite" in kind or "v5e" in kind or "v6e" in kind:
        return 1
    if any(tag in kind for tag in ("v7", "v5p", "v4")):
        return 2
    return 1


def _round_up(v, m):
    return ((v + m - 1) // m) * m


@functools.partial(jax.jit, static_argnames=("block_b",))
def vae_forward(x, eps, params, block_b=None):
    p = params
    B, input_size = x.shape
    hidden = p["w1"].shape[1]
    latent = p["wmu"].shape[1]
    output = p["wd3"].shape[1]
    packed_width = output + 2 * latent
    wdt = jnp.bfloat16  # matmul operand dtype; f32 accumulation in-kernel

    # ---- generation-aware batch tile ----
    if block_b is None:
        if _tensorcores_per_chip() >= 2 and B >= 16:
            # >= 2 "parallel" grid steps so both TensorCores get work (v7x).
            block_b = min(256, max(8, (B // 2) // 8 * 8))
        else:
            # Single TC (v5e/v6e): the grid is a serial loop -> one big step.
            block_b = min(512, _round_up(B, 8))
    n_steps = (B + block_b - 1) // block_b
    B_pad = n_steps * block_b

    # ---- wrapper-side algebra: fold encoder layer 2 into the heads ----
    #   (h @ w2 + b2) @ whead + bhead  ==  h @ (w2 @ whead) + (b2 @ whead + bhead)
    whead = jnp.concatenate([p["wmu"], p["wlv"]], axis=1)          # [H, 2L]
    bhead = jnp.concatenate([p["bmu"], p["blv"]], axis=1)          # [1, 2L]
    whead_fused = p["w2"] @ whead                                   # [H, 2L]
    bhead_fused = p["b2"] @ whead + bhead                           # [1, 2L]

    # Pack all bias rows + logvar bounds into ONE small f32 slab (single DMA).
    max_feat = max(hidden, 2 * latent, output, latent)

    def _row(v):
        return jnp.pad(v, ((0, 0), (0, max_feat - v.shape[1])))

    bias_pack = jnp.concatenate(
        [_row(p["b1"]), _row(bhead_fused), _row(p["bd1"]),
         _row(p["bd2"]), _row(p["bd3"]),
         _row(p["min_logvar"]), _row(p["max_logvar"])], axis=0)     # [7, max_feat]

    # bf16 matmul operands (halved DMA/VMEM; bf16-native MXU).
    x_mm = x.astype(wdt)
    w1 = p["w1"].astype(wdt)
    wh = whead_fused.astype(wdt)
    wd1 = p["wd1"].astype(wdt)
    wd2 = p["wd2"].astype(wdt)
    wd3 = p["wd3"].astype(wdt)

    # Pad the batch so the grid covers it exactly (tail sliced off below).
    if B_pad != B:
        x_mm = jnp.pad(x_mm, ((0, B_pad - B), (0, 0)))
        eps = jnp.pad(eps, ((0, B_pad - B), (0, 0)))

    def row_spec(feat):
        return pl.BlockSpec((block_b, feat), lambda i: (i, 0))

    def full_spec(shape):
        return pl.BlockSpec(shape, lambda i: (0,) * len(shape))

    in_specs = [
        row_spec(input_size),    # x
        row_spec(latent),        # eps
        full_spec(w1.shape), full_spec(wh.shape),
        full_spec(wd1.shape), full_spec(wd2.shape), full_spec(wd3.shape),
        full_spec(bias_pack.shape),
    ]
    out_specs = row_spec(packed_width)
    out_shape = jax.ShapeDtypeStruct((B_pad, packed_width), jnp.float32)

    # ---- explicit VMEM budget: double-buffered tiles + activation margin ----
    def nbytes(a):
        return math.prod(a.shape) * a.dtype.itemsize

    tile_bytes = (
        block_b * input_size * 2 + block_b * latent * 4              # x, eps tiles
        + nbytes(w1) + nbytes(wh) + nbytes(wd1) + nbytes(wd2) + nbytes(wd3)
        + nbytes(bias_pack)
        + block_b * packed_width * 4)                                # output tile
    act_bytes = block_b * (3 * hidden + 4 * latent + 2 * output) * 4
    vmem_limit = int(min(64 << 20, max(16 << 20, 2 * tile_bytes + act_bytes + (2 << 20))))

    kernel = functools.partial(
        _vae_kernel, hidden_size=hidden, latent_size=latent, output_size=output)

    grid_spec = pltpu.PrefetchScalarGridSpec(
        num_scalar_prefetch=0,
        grid=(n_steps,),
        in_specs=in_specs,
        out_specs=out_specs,
    )

    packed = pl.pallas_call(
        kernel,
        grid_spec=grid_spec,
        out_shape=out_shape,
        compiler_params=pltpu.CompilerParams(
            dimension_semantics=("parallel",),
            vmem_limit_bytes=vmem_limit),
    )(x_mm, eps, w1, wh, wd1, wd2, wd3, bias_pack)

    packed = packed[:B]
    decoded = packed[:, :output]
    mu = packed[:, output:output + latent]
    logvar = packed[:, output + latent:]
    return decoded, mu, logvar


# ---------------------------------------------------------------------------
# Parameters / reference
# ---------------------------------------------------------------------------
def init_params(key, input_size, hidden_size, latent_size, output_size):
    """Deterministic synthetic parameters. Weights stored as [in, out]."""
    ks = jax.random.split(key, 14)

    def lin(kw, kb, fan_in, fan_out):
        w = jax.random.normal(kw, (fan_in, fan_out), jnp.float32) * 0.1
        b = jax.random.normal(kb, (1, fan_out), jnp.float32) * 0.01
        return w, b

    w1, b1 = lin(ks[0], ks[1], input_size, hidden_size)
    w2, b2 = lin(ks[2], ks[3], hidden_size, hidden_size)
    wmu, bmu = lin(ks[4], ks[5], hidden_size, latent_size)
    wlv, blv = lin(ks[6], ks[7], hidden_size, latent_size)
    wd1, bd1 = lin(ks[8], ks[9], latent_size, hidden_size)
    wd2, bd2 = lin(ks[10], ks[11], hidden_size, hidden_size)
    wd3, bd3 = lin(ks[12], ks[13], hidden_size, output_size)

    return dict(
        w1=w1, b1=b1, w2=w2, b2=b2,
        wmu=wmu, bmu=bmu, wlv=wlv, blv=blv,
        wd1=wd1, bd1=bd1, wd2=wd2, bd2=bd2, wd3=wd3, bd3=bd3,
        min_logvar=jnp.full((1, latent_size), -0.5, jnp.float32),
        max_logvar=jnp.full((1, latent_size), 0.5, jnp.float32),
    )


def vae_forward_ref(x, eps, p):
    """Pure-JAX f32 reference mirroring the PyTorch forward exactly."""
    silu = lambda v: v * jax.nn.sigmoid(v)
    h = silu(x @ p["w1"] + p["b1"])
    h = h @ p["w2"] + p["b2"]
    mu = h @ p["wmu"] + p["bmu"]
    logvar = h @ p["wlv"] + p["blv"]
    lv = jnp.clip(logvar, p["min_logvar"], p["max_logvar"])
    z = mu + eps * jnp.exp(0.5 * lv)
    d = silu(z @ p["wd1"] + p["bd1"])
    d = silu(d @ p["wd2"] + p["bd2"])
    d = d @ p["wd3"] + p["bd3"]
    return d, mu, logvar


if __name__ == "__main__":
    # Small shapes consistent with the module.
    batch, input_size, hidden_size, latent_size, output_size = 16, 32, 64, 16, 32

    key = jax.random.PRNGKey(0)
    k_params, k_x, k_eps = jax.random.split(key, 3)

    params = init_params(k_params, input_size, hidden_size, latent_size, output_size)
    x = jax.random.normal(k_x, (batch, input_size), jnp.float32)
    # torch.randn_like(std) equivalent, generated in glue code for determinism.
    # TODO(synk): could move noise generation in-kernel via pltpu.prng_random_bits
    # if RNG parity with the host were not required.
    eps = jax.random.normal(k_eps, (batch, latent_size), jnp.float32)

    dec, mu, logvar = vae_forward(x, eps, params)
    jax.block_until_ready((dec, mu, logvar))

    dec_r, mu_r, logvar_r = vae_forward_ref(x, eps, params)

    # bf16 matmul operands + approx-reciprocal sigmoid + w2->head fusion:
    # tolerance loosened vs the pure-f32 reference (values here are O(1),
    # observed error is well below this bound).
    tol = dict(atol=5e-2, rtol=5e-2)
    assert jnp.allclose(dec, dec_r, **tol)
    assert jnp.allclose(mu, mu_r, **tol)
    assert jnp.allclose(logvar, logvar_r, **tol)

    print("KERNEL_OK")
</pallas_src>

<mosaic_0001>
module attributes {stable_mosaic.version = 11 : i64} {
  func.func @_vae_kernel(%arg0: i32, %arg1: memref<16x32xbf16, #tpu.memory_space<vmem>>, %arg2: memref<16x16xf32, #tpu.memory_space<vmem>>, %arg3: memref<32x64xbf16, #tpu.memory_space<vmem>>, %arg4: memref<64x32xbf16, #tpu.memory_space<vmem>>, %arg5: memref<16x64xbf16, #tpu.memory_space<vmem>>, %arg6: memref<64x64xbf16, #tpu.memory_space<vmem>>, %arg7: memref<64x32xbf16, #tpu.memory_space<vmem>>, %arg8: memref<7x64xf32, #tpu.memory_space<vmem>>, %arg9: memref<16x64xf32, #tpu.memory_space<vmem>>) attributes {dimension_semantics = [#tpu.dimension_semantics<parallel>], iteration_bounds = array<i64: 1>, scalar_prefetch = 0 : i64, scratch_operands = 0 : i64, tpu.core_type = #tpu.core_type<tc>, window_params = [{transform_indices = @transform_0, window_bounds = array<i64: 16, 32>}, {transform_indices = @transform_1, window_bounds = array<i64: 16, 16>}, {pipeline_mode = #tpu.pipeline_mode<synchronous>, transform_indices = @transform_2, window_bounds = array<i64: 32, 64>}, {pipeline_mode = #tpu.pipeline_mode<synchronous>, transform_indices = @transform_3, window_bounds = array<i64: 64, 32>}, {pipeline_mode = #tpu.pipeline_mode<synchronous>, transform_indices = @transform_4, window_bounds = array<i64: 16, 64>}, {pipeline_mode = #tpu.pipeline_mode<synchronous>, transform_indices = @transform_5, window_bounds = array<i64: 64, 64>}, {pipeline_mode = #tpu.pipeline_mode<synchronous>, transform_indices = @transform_6, window_bounds = array<i64: 64, 32>}, {pipeline_mode = #tpu.pipeline_mode<synchronous>, transform_indices = @transform_7, window_bounds = array<i64: 7, 64>}, {transform_indices = @transform_8, window_bounds = array<i64: 16, 64>}]} {
    %c0 = arith.constant 0 : index
    %c0_0 = arith.constant 0 : index
    %0 = vector.load %arg8[%c0, %c0_0] : memref<7x64xf32, #tpu.memory_space<vmem>>, vector<1x64xf32>
    %c1 = arith.constant 1 : index
    %c0_1 = arith.constant 0 : index
    %1 = vector.load %arg8[%c1, %c0_1] : memref<7x64xf32, #tpu.memory_space<vmem>>, vector<1x32xf32>
    %c2 = arith.constant 2 : index
    %c0_2 = arith.constant 0 : index
    %2 = vector.load %arg8[%c2, %c0_2] : memref<7x64xf32, #tpu.memory_space<vmem>>, vector<1x64xf32>
    %c3 = arith.constant 3 : index
    %c0_3 = arith.constant 0 : index
    %3 = vector.load %arg8[%c3, %c0_3] : memref<7x64xf32, #tpu.memory_space<vmem>>, vector<1x64xf32>
    %c4 = arith.constant 4 : index
    %c0_4 = arith.constant 0 : index
    %4 = vector.load %arg8[%c4, %c0_4] : memref<7x64xf32, #tpu.memory_space<vmem>>, vector<1x32xf32>
    %c5 = arith.constant 5 : index
    %c0_5 = arith.constant 0 : index
    %5 = vector.load %arg8[%c5, %c0_5] : memref<7x64xf32, #tpu.memory_space<vmem>>, vector<1x16xf32>
    %c6 = arith.constant 6 : index
    %c0_6 = arith.constant 0 : index
    %6 = vector.load %arg8[%c6, %c0_6] : memref<7x64xf32, #tpu.memory_space<vmem>>, vector<1x16xf32>
    %c0_7 = arith.constant 0 : index
    %c0_8 = arith.constant 0 : index
    %7 = vector.load %arg1[%c0_7, %c0_8] : memref<16x32xbf16, #tpu.memory_space<vmem>>, vector<16x32xbf16>
    %c0_9 = arith.constant 0 : index
    %c0_10 = arith.constant 0 : index
    %8 = vector.load %arg3[%c0_9, %c0_10] : memref<32x64xbf16, #tpu.memory_space<vmem>>, vector<32x64xbf16>
    %cst = arith.constant dense<0.000000e+00> : vector<16x64xf32>
    %9 = tpu.matmul %7, %8, %cst {dimension_numbers = #tpu.dot_dimension_numbers<[1], [0], [0], [1], [0, 0, 1, 1], [], []>} : vector<16x32xbf16>, vector<32x64xbf16>, vector<16x64xf32> -> vector<16x64xf32>
    %10 = vector.broadcast %0 : vector<1x64xf32> to vector<16x64xf32>
    %11 = arith.addf %9, %10 : vector<16x64xf32>
    %cst_11 = arith.constant 0.000000e+00 : f32
    %12 = vector.broadcast %cst_11 : f32 to vector<16x64xf32>
    %13 = arith.subf %12, %11 : vector<16x64xf32>
    %14 = math.exp %13 : vector<16x64xf32>
    %cst_12 = arith.constant 1.000000e+00 : f32
    %15 = vector.broadcast %cst_12 : f32 to vector<16x64xf32>
    %16 = arith.addf %15, %14 : vector<16x64xf32>
    %17 = tpu.reciprocal %16 {approx = true} : vector<16x64xf32> -> vector<16x64xf32>
    %18 = arith.mulf %11, %17 : vector<16x64xf32>
    %19 = arith.truncf %18 : vector<16x64xf32> to vector<16x64xbf16>
    %c0_13 = arith.constant 0 : index
    %c0_14 = arith.constant 0 : index
    %20 = vector.load %arg4[%c0_13, %c0_14] : memref<64x32xbf16, #tpu.memory_space<vmem>>, vector<64x32xbf16>
    %cst_15 = arith.constant dense<0.000000e+00> : vector<16x32xf32>
    %21 = tpu.matmul %19, %20, %cst_15 {dimension_numbers = #tpu.dot_dimension_numbers<[1], [0], [0], [1], [0, 0, 1, 1], [], []>} : vector<16x64xbf16>, vector<64x32xbf16>, vector<16x32xf32> -> vector<16x32xf32>
    %22 = vector.broadcast %1 : vector<1x32xf32> to vector<16x32xf32>
    %23 = arith.addf %21, %22 : vector<16x32xf32>
    %24 = vector.extract_strided_slice %23 {offsets = [0, 0], sizes = [16, 16], strides = [1, 1]} : vector<16x32xf32> to vector<16x16xf32>
    %25 = vector.extract_strided_slice %23 {offsets = [0, 16], sizes = [16, 16], strides = [1, 1]} : vector<16x32xf32> to vector<16x16xf32>
    %26 = vector.broadcast %5 : vector<1x16xf32> to vector<16x16xf32>
    %27 = arith.maximumf %25, %26 : vector<16x16xf32>
    %28 = vector.broadcast %6 : vector<1x16xf32> to vector<16x16xf32>
    %29 = arith.minimumf %27, %28 : vector<16x16xf32>
    %cst_16 = arith.constant 5.000000e-01 : f32
    %30 = vector.broadcast %cst_16 : f32 to vector<16x16xf32>
    %31 = arith.mulf %30, %29 : vector<16x16xf32>
    %32 = math.exp %31 : vector<16x16xf32>
    %c0_17 = arith.constant 0 : index
    %c0_18 = arith.constant 0 : index
    %33 = vector.load %arg2[%c0_17, %c0_18] : memref<16x16xf32, #tpu.memory_space<vmem>>, vector<16x16xf32>
    %34 = arith.mulf %33, %32 : vector<16x16xf32>
    %35 = arith.addf %24, %34 : vector<16x16xf32>
    %36 = arith.truncf %35 : vector<16x16xf32> to vector<16x16xbf16>
    %c0_19 = arith.constant 0 : index
    %c0_20 = arith.constant 0 : index
    %37 = vector.load %arg5[%c0_19, %c0_20] : memref<16x64xbf16, #tpu.memory_space<vmem>>, vector<16x64xbf16>
    %cst_21 = arith.constant dense<0.000000e+00> : vector<16x64xf32>
    %38 = tpu.matmul %36, %37, %cst_21 {dimension_numbers = #tpu.dot_dimension_numbers<[1], [0], [0], [1], [0, 0, 1, 1], [], []>} : vector<16x16xbf16>, vector<16x64xbf16>, vector<16x64xf32> -> vector<16x64xf32>
    %39 = vector.broadcast %2 : vector<1x64xf32> to vector<16x64xf32>
    %40 = arith.addf %38, %39 : vector<16x64xf32>
    %cst_22 = arith.constant 0.000000e+00 : f32
    %41 = vector.broadcast %cst_22 : f32 to vector<16x64xf32>
    %42 = arith.subf %41, %40 : vector<16x64xf32>
    %43 = math.exp %42 : vector<16x64xf32>
    %cst_23 = arith.constant 1.000000e+00 : f32
    %44 = vector.broadcast %cst_23 : f32 to vector<16x64xf32>
    %45 = arith.addf %44, %43 : vector<16x64xf32>
    %46 = tpu.reciprocal %45 {approx = true} : vector<16x64xf32> -> vector<16x64xf32>
    %47 = arith.mulf %40, %46 : vector<16x64xf32>
    %48 = arith.truncf %47 : vector<16x64xf32> to vector<16x64xbf16>
    %c0_24 = arith.constant 0 : index
    %c0_25 = arith.constant 0 : index
    %49 = vector.load %arg6[%c0_24, %c0_25] : memref<64x64xbf16, #tpu.memory_space<vmem>>, vector<64x64xbf16>
    %cst_26 = arith.constant dense<0.000000e+00> : vector<16x64xf32>
    %50 = tpu.matmul %48, %49, %cst_26 {dimension_numbers = #tpu.dot_dimension_numbers<[1], [0], [0], [1], [0, 0, 1, 1], [], []>} : vector<16x64xbf16>, vector<64x64xbf16>, vector<16x64xf32> -> vector<16x64xf32>
    %51 = vector.broadcast %3 : vector<1x64xf32> to vector<16x64xf32>
    %52 = arith.addf %50, %51 : vector<16x64xf32>
    %cst_27 = arith.constant 0.000000e+00 : f32
    %53 = vector.broadcast %cst_27 : f32 to vector<16x64xf32>
    %54 = arith.subf %53, %52 : vector<16x64xf32>
    %55 = math.exp %54 : vector<16x64xf32>
    %cst_28 = arith.constant 1.000000e+00 : f32
    %56 = vector.broadcast %cst_28 : f32 to vector<16x64xf32>
    %57 = arith.addf %56, %55 : vector<16x64xf32>
    %58 = tpu.reciprocal %57 {approx = true} : vector<16x64xf32> -> vector<16x64xf32>
    %59 = arith.mulf %52, %58 : vector<16x64xf32>
    %60 = arith.truncf %59 : vector<16x64xf32> to vector<16x64xbf16>
    %c0_29 = arith.constant 0 : index
    %c0_30 = arith.constant 0 : index
    %61 = vector.load %arg7[%c0_29, %c0_30] : memref<64x32xbf16, #tpu.memory_space<vmem>>, vector<64x32xbf16>
    %cst_31 = arith.constant dense<0.000000e+00> : vector<16x32xf32>
    %62 = tpu.matmul %60, %61, %cst_31 {dimension_numbers = #tpu.dot_dimension_numbers<[1], [0], [0], [1], [0, 0, 1, 1], [], []>} : vector<16x64xbf16>, vector<64x32xbf16>, vector<16x32xf32> -> vector<16x32xf32>
    %63 = vector.broadcast %4 : vector<1x32xf32> to vector<16x32xf32>
    %64 = arith.addf %62, %63 : vector<16x32xf32>
    %c0_32 = arith.constant 0 : index
    %c0_33 = arith.constant 0 : index
    %65 = vector.load %arg9[%c0_32, %c0_33] : memref<16x64xf32, #tpu.memory_space<vmem>>, vector<16x32xf32>
    tpu.vector_store %arg9[%c0_32, %c0_33], %64 {strides = array<i32>} : memref<16x64xf32, #tpu.memory_space<vmem>>, vector<16x32xf32>,
    %c0_34 = arith.constant 0 : index
    %c32 = arith.constant 32 : index
    %66 = vector.load %arg9[%c0_34, %c32] : memref<16x64xf32, #tpu.memory_space<vmem>>, vector<16x16xf32>
    tpu.vector_store %arg9[%c0_34, %c32], %24 {strides = array<i32>} : memref<16x64xf32, #tpu.memory_space<vmem>>, vector<16x16xf32>,
    %c0_35 = arith.constant 0 : index
    %c48 = arith.constant 48 : index
    %67 = vector.load %arg9[%c0_35, %c48] : memref<16x64xf32, #tpu.memory_space<vmem>>, vector<16x16xf32>
    tpu.vector_store %arg9[%c0_35, %c48], %25 {strides = array<i32>} : memref<16x64xf32, #tpu.memory_space<vmem>>, vector<16x16xf32>,
    return
  }
  func.func @transform_0(%arg0: i32) -> (i32, i32) {
    %c0_i32 = arith.constant 0 : i32
    %c0_i32_0 = arith.constant 0 : i32
    return %arg0, %c0_i32 : i32, i32
  }
  func.func @transform_1(%arg0: i32) -> (i32, i32) {
    %c0_i32 = arith.constant 0 : i32
    %c0_i32_0 = arith.constant 0 : i32
    return %arg0, %c0_i32 : i32, i32
  }
  func.func @transform_2(%arg0: i32) -> (i32, i32) {
    %c0_i32 = arith.constant 0 : i32
    %c0_i32_0 = arith.constant 0 : i32
    %c0_i32_1 = arith.constant 0 : i32
    return %c0_i32, %c0_i32_0 : i32, i32
  }
  func.func @transform_3(%arg0: i32) -> (i32, i32) {
    %c0_i32 = arith.constant 0 : i32
    %c0_i32_0 = arith.constant 0 : i32
    %c0_i32_1 = arith.constant 0 : i32
    return %c0_i32, %c0_i32_0 : i32, i32
  }
  func.func @transform_4(%arg0: i32) -> (i32, i32) {
    %c0_i32 = arith.constant 0 : i32
    %c0_i32_0 = arith.constant 0 : i32
    %c0_i32_1 = arith.constant 0 : i32
    return %c0_i32, %c0_i32_0 : i32, i32
  }
  func.func @transform_5(%arg0: i32) -> (i32, i32) {
    %c0_i32 = arith.constant 0 : i32
    %c0_i32_0 = arith.constant 0 : i32
    %c0_i32_1 = arith.constant 0 : i32
    return %c0_i32, %c0_i32_0 : i32, i32
  }
  func.func @transform_6(%arg0: i32) -> (i32, i32) {
    %c0_i32 = arith.constant 0 : i32
    %c0_i32_0 = arith.constant 0 : i32
    %c0_i32_1 = arith.constant 0 : i32
    return %c0_i32, %c0_i32_0 : i32, i32
  }
  func.func @transform_7(%arg0: i32) -> (i32, i32) {
    %c0_i32 = arith.constant 0 : i32
    %c0_i32_0 = arith.constant 0 : i32
    %c0_i32_1 = arith.constant 0 : i32
    return %c0_i32, %c0_i32_0 : i32, i32
  }
  func.func @transform_8(%arg0: i32) -> (i32, i32) {
    %c0_i32 = arith.constant 0 : i32
    %c0_i32_0 = arith.constant 0 : i32
    return %arg0, %c0_i32 : i32, i32
  }
}

</mosaic_0001>

<llo_original>
// kernel: vae_forward.1
$region0: #{vae_forward.1}
  #allocation0 [shape = 'u32[]', space=smem, size = 0x4, offset = 0x4, fixed_abs, tag = 'smem constant byte address 0x4 - core index']
  #allocation1 [shape = 'u32[144,128]{1,0:T(1,128)}', space=vmem, size = 0x12000, scoped, tag = 'internal scratch']
  %s0 = inlined_call_operand.vmem [shape: bf16[16,32], index: 0, kind: input, shape index: {}]
  %s1 = inlined_call_operand.vmem [shape: f32[16,16], index: 1, kind: input, shape index: {}]
  %s2 = inlined_call_operand.vmem [shape: bf16[32,64], index: 2, kind: input, shape index: {}]
  %s3 = inlined_call_operand.vmem [shape: bf16[64,32], index: 3, kind: input, shape index: {}]
  %s4 = inlined_call_operand.vmem [shape: bf16[16,64], index: 4, kind: input, shape index: {}]
  %s5 = inlined_call_operand.vmem [shape: bf16[64,64], index: 5, kind: input, shape index: {}]
  %s6 = inlined_call_operand.vmem [shape: bf16[64,32], index: 6, kind: input, shape index: {}]
  %s7 = inlined_call_operand.vmem [shape: f32[7,64], index: 7, kind: input, shape index: {}]
  %s8 = inlined_call_operand.vmem [shape: f32[16,64], index: 8, kind: output, shape index: {}]
  %s9 = sld [smem:[#allocation0]]
  $region42: #{vae_forward.1} parent=0
    _
  %s11 = ssub.s32 1, %s9
  %s12 = scalar_select 0, %s11, %s9
  // Predicated region
  $region2: #{vae_forward.1} parent=0 // pred_check
    _
  $region3: #{vae_forward.1} parent=0 // pred_check_branch
    %14 = sbr.rel (0) target = $region5
  $region4: #{vae_forward.1} parent=0 // pred_region
    _
  $region5: #{vae_forward.1} parent=0 // pred_fallthru
    _
  // Predicated region
  $region6: #{vae_forward.1} parent=0 // pred_check
    _
  $region7: #{vae_forward.1} parent=0 // pred_check_branch
    %16 = sbr.rel (0) target = $region9
  $region8: #{vae_forward.1} parent=0 // pred_region
    _
  $region9: #{vae_forward.1} parent=0 // pred_fallthru
    _
  // Predicated region
  $region10: #{vae_forward.1} parent=0 // pred_check
    _
  $region11: #{vae_forward.1} parent=0 // pred_check_branch
    %18 = sbr.rel (0) target = $region13
  $region12: #{vae_forward.1} parent=0 // pred_region
    _
  $region13: #{vae_forward.1} parent=0 // pred_fallthru
    _
  // Predicated region
  $region14: #{vae_forward.1} parent=0 // pred_check
    _
  $region15: #{vae_forward.1} parent=0 // pred_check_branch
    %20 = sbr.rel (0) target = $region17
  $region16: #{vae_forward.1} parent=0 // pred_region
    _
  $region17: #{vae_forward.1} parent=0 // pred_fallthru
    _
  // Predicated region
  $region18: #{vae_forward.1} parent=0 // pred_check
    _
  $region19: #{vae_forward.1} parent=0 // pred_check_branch
    %22 = sbr.rel (0) target = $region21
  $region20: #{vae_forward.1} parent=0 // pred_region
    _
  $region21: #{vae_forward.1} parent=0 // pred_fallthru
    _
  // Predicated region
  $region22: #{vae_forward.1} parent=0 // pred_check
    _
  $region23: #{vae_forward.1} parent=0 // pred_check_branch
    %24 = sbr.rel (0) target = $region25
  $region24: #{vae_forward.1} parent=0 // pred_region
    _
  $region25: #{vae_forward.1} parent=0 // pred_fallthru
    _
  // Predicated region
  $region26: #{vae_forward.1} parent=0 // pred_check
    _
  $region27: #{vae_forward.1} parent=0 // pred_check_branch
    %26 = sbr.rel (0) target = $region29
  $region28: #{vae_forward.1} parent=0 // pred_region
    _
  $region29: #{vae_forward.1} parent=0 // pred_fallthru
    _
  // Predicated region
  $region30: #{vae_forward.1} parent=0 // pred_check
    _
  $region31: #{vae_forward.1} parent=0 // pred_check_branch
    %28 = sbr.rel (0) target = $region33
  $region32: #{vae_forward.1} parent=0 // pred_region
    _
  $region33: #{vae_forward.1} parent=0 // pred_fallthru
    _
  %v30 = vld [vmem:[%s7] sm:$0x1]
  %v31 = vld [vmem:[%s7 + $0x1] sm:$0x1]
  %v32 = vld [vmem:[%s7 + $0x2] sm:$0x1]
  %v33 = vld [vmem:[%s7 + $0x3] sm:$0x1]
  %v34 = vld [vmem:[%s7 + $0x4] sm:$0x1]
  %v35 = vld [vmem:[%s7 + $0x5] sm:$0x1]
  %v36 = vld [vmem:[%s7 + $0x6] sm:$0x1]
  %v37 = vld [vmem:[%s0] sm:$0xf]
  %v38 = vld [vmem:[%s0 + $0x4] sm:$0xf]
  %v39 = vld [vmem:[%s2] sm:$0xf]
  %v40 = vld [vmem:[%s2 + $0x4] sm:$0xf]
  %v41 = vld [vmem:[%s2 + $0x8] sm:$0xf]
  %v42 = vld [vmem:[%s2 + $0xc] sm:$0xf]
  %v43 = vlaneseq
  %v44 = vshrl.u32 %v43, 7
  %v45 = vsub.s32 0, %v44
  %v46 = vrot.slane %v30, %v45
  %v49 = vunpack.c.l.b16 %v37
  %v50 = vunpack.c.l.b16 %v38
  %v51 = vpack.c.b16 %v50, %v49
  %v56 = vunpack.c.l.b16 %v39
  %v57 = vunpack.c.l.b16 %v40
  %v58 = vunpack.c.l.b16 %v41
  %v59 = vunpack.c.l.b16 %v42
  %v60 = vpack.c.b16 %v57, %v56
  %v61 = vpack.c.b16 %v59, %v58
  %vm64 = vcmask 261120
  %v66 = vsel %vm64, %v51, 0
  %68 = vmatprep.subr.bf16.mxu0 0
  %69 = vmatpush1.bf16.msra.mxu0 %v60
  %70 = vmatprep.subr.bf16.mxu0 0
  %71 = vmatpush1.bf16.msra.mxu0 %v61
  %72 = vmatprep.subr.bf16.mxu0 0
  %73 = vmatpush1.bf16.msra.mxu0 0
  %74 = vmatprep.subr.bf16.mxu0 0
  %75 = vmatpush1.bf16.msra.mxu0 0
  %76 = vmatprep.subr.bf16.mxu0 0
  %77 = vmatpush1.bf16.msra.mxu0 0
  %78 = vmatprep.subr.bf16.mxu0 0
  %79 = vmatpush1.bf16.msra.mxu0 0
  %80 = vmatprep.subr.bf16.mxu0 0
  %81 = vmatpush1.bf16.msra.mxu0 0
  %82 = vmatprep.subr.bf16.mxu0 0
  %83 = vmatpush1.bf16.msra.mxu0 0
  %84 = vmatprep.subr.bf16.mxu0 0
  %85 = vmatpush1.bf16.msra.mxu0 0
  %86 = vmatprep.subr.bf16.mxu0 0
  %87 = vmatpush1.bf16.msra.mxu0 0
  %88 = vmatprep.subr.bf16.mxu0 0
  %89 = vmatpush1.bf16.msra.mxu0 0
  %90 = vmatprep.subr.bf16.mxu0 0
  %91 = vmatpush1.bf16.msra.mxu0 0
  %92 = vmatprep.subr.bf16.mxu0 0
  %93 = vmatpush1.bf16.msra.mxu0 0
  %94 = vmatprep.subr.bf16.mxu0 0
  %95 = vmatpush1.bf16.msra.mxu0 0
  %96 = vmatprep.subr.bf16.mxu0 0
  %97 = vmatpush1.bf16.msra.mxu0 0
  %98 = vmatprep.subr.bf16.mxu0 0
  %99 = vmatpush1.bf16.msra.mxu0 0
  %100 = vmatprep.mubr.bf16.mxu0 0
  %101 = vmatmul.mubr.bf16.gmra.mrb[0].mxu0 %v66
  %v102 = vpop.f32.mrb[0].mxu0
  %v103 = vadd.f32 %v46, %v102
  %v104 = vpop.f32.mrb[0].mxu0
  %v105 = vpop.f32.mrb[0].mxu0
  %v106 = vadd.f32 %v46, %v105
  %v107 = vpop.f32.mrb[0].mxu0
  %108 = vdwg.mxu0
  %v109 = vsub.f32 0.0, %v103
  %v110 = vsub.f32 0.0, %v106
  %v111 = vmul.f32 %v109, 1.442695
  %v112 = vpow.pop %v111
  %v113 = vmul.f32 %v110, 1.442695
  %v114 = vpow.pop %v113
  %v115 = vadd.f32 %v112, 1.0
  %v116 = vadd.f32 %v114, 1.0
  %v117 = vrcp.pop %v115
  %v118 = vrcp.pop %v116
  %v119 = vmul.f32 %v103, %v117
  %v120 = vmul.f32 %v106, %v118
  %v121 = vpack.c.bf16 %v120, %v119
  %v122 = vld [vmem:[%s3] sm:$0xf]
  %v123 = vld [vmem:[%s3 + $0x4] sm:$0xf]
  %v124 = vld [vmem:[%s3 + $0x8] sm:$0xf]
  %v125 = vld [vmem:[%s3 + $0xc] sm:$0xf]
  %v126 = vld [vmem:[%s3 + $0x10] sm:$0xf]
  %v127 = vld [vmem:[%s3 + $0x14] sm:$0xf]
  %v128 = vld [vmem:[%s3 + $0x18] sm:$0xf]
  %v129 = vld [vmem:[%s3 + $0x1c] sm:$0xf]
  %v130 = vlaneseq
  %v131 = vshrl.u32 %v130, 7
  %v132 = vsub.s32 0, %v131
  %v133 = vrot.slane %v31, %v132
  %v142 = vunpack.c.l.b16 %v122
  %v143 = vunpack.c.l.b16 %v123
  %v144 = vunpack.c.l.b16 %v124
  %v145 = vunpack.c.l.b16 %v125
  %v146 = vunpack.c.l.b16 %v126
  %v147 = vunpack.c.l.b16 %v127
  %v148 = vunpack.c.l.b16 %v128
  %v149 = vunpack.c.l.b16 %v129
  %v150 = vpack.c.b16 %v143, %v142
  %v151 = vpack.c.b16 %v145, %v144
  %v152 = vpack.c.b16 %v147, %v146
  %v153 = vpack.c.b16 %v149, %v148
  %vm158 = vcmask 523264
  %v160 = vsel %vm158, %v121, 0
  %162 = vmatprep.subr.bf16.mxu0 0
  %163 = vmatpush1.bf16.msra.mxu0 %v150
  %164 = vmatprep.subr.bf16.mxu0 0
  %165 = vmatpush1.bf16.msra.mxu0 %v151
  %166 = vmatprep.subr.bf16.mxu0 0
  %167 = vmatpush1.bf16.msra.mxu0 %v152
  %168 = vmatprep.subr.bf16.mxu0 0
  %169 = vmatpush1.bf16.msra.mxu0 %v153
  %170 = vmatprep.subr.bf16.mxu0 0
  %171 = vmatpush1.bf16.msra.mxu0 0
  %172 = vmatprep.subr.bf16.mxu0 0
  %173 = vmatpush1.bf16.msra.mxu0 0
  %174 = vmatprep.subr.bf16.mxu0 0
  %175 = vmatpush1.bf16.msra.mxu0 0
  %176 = vmatprep.subr.bf16.mxu0 0
  %177 = vmatpush1.bf16.msra.mxu0 0
  %178 = vmatprep.subr.bf16.mxu0 0
  %179 = vmatpush1.bf16.msra.mxu0 0
  %180 = vmatprep.subr.bf16.mxu0 0
  %181 = vmatpush1.bf16.msra.mxu0 0
  %182 = vmatprep.subr.bf16.mxu0 0
  %183 = vmatpush1.bf16.msra.mxu0 0
  %184 = vmatprep.subr.bf16.mxu0 0
  %185 = vmatpush1.bf16.msra.mxu0 0
  %186 = vmatprep.subr.bf16.mxu0 0
  %187 = vmatpush1.bf16.msra.mxu0 0
  %188 = vmatprep.subr.bf16.mxu0 0
  %189 = vmatpush1.bf16.msra.mxu0 0
  %190 = vmatprep.subr.bf16.mxu0 0
  %191 = vmatpush1.bf16.msra.mxu0 0
  %192 = vmatprep.subr.bf16.mxu0 0
  %193 = vmatpush1.bf16.msra.mxu0 0
  %194 = vmatprep.mubr.bf16.mxu0 0
  %195 = vmatmul.mubr.bf16.gmra.mrb[0].mxu0 %v160
  %v196 = vpop.f32.mrb[0].mxu0
  %v197 = vadd.f32 %v133, %v196
  %v198 = vpop.f32.mrb[0].mxu0
  %v199 = vpop.f32.mrb[0].mxu0
  %v200 = vadd.f32 %v133, %v199
  %v201 = vpop.f32.mrb[0].mxu0
  %202 = vdwg.mxu0
  %v203 = vlaneseq
  %v204 = vshrl.u32 %v203, 7
  %v205 = vsub.s32 0, %v204
  %v206 = vrot.slane %v35, %v205
  %208 = vrot.lane.b32.xlu0 %v206, 16
  %v209 = vpop.permute.xlu0 %208
  %v211 = vmax.f32 %v197, %v209
  %v212 = vmax.f32 %v200, %v209
  %v213 = vlaneseq
  %v214 = vshrl.u32 %v213, 7
  %v215 = vsub.s32 0, %v214
  %v216 = vrot.slane %v36, %v215
  %218 = vrot.lane.b32.xlu0 %v216, 16
  %v219 = vpop.permute.xlu0 %218
  %v221 = vmin.f32 %v211, %v219
  %v222 = vmin.f32 %v212, %v219
  %v223 = vmul.f32 %v221, 0.5
  %v224 = vmul.f32 %v222, 0.5
  %v225 = vmul.f32 %v223, 1.442695
  %v226 = vpow.pop %v225
  %v227 = vmul.f32 %v224, 1.442695
  %v228 = vpow.pop %v227
  %v229 = vld [vmem:[%s1] sm:$0xff]
  %v230 = vld [vmem:[%s1 + $0x8] sm:$0xff]
  %233 = vrot.lane.b32.xlu0 %v226, 112
  %v234 = vpop.permute.xlu0 %233
  %235 = vrot.lane.b32.xlu0 %v228, 112
  %v236 = vpop.permute.xlu0 %235
  %v239 = vmul.f32 %v229, %v234
  %v240 = vmul.f32 %v230, %v236
  %v241 = vadd.f32 %v197, %v239
  %v242 = vadd.f32 %v200, %v240
  %v243 = vpack.c.bf16 %v242, %v241
  %v244 = vld [vmem:[%s4] sm:$0xf]
  %v245 = vld [vmem:[%s4 + $0x4] sm:$0xf]
  %v246 = vlaneseq
  %v247 = vshrl.u32 %v246, 7
  %v248 = vsub.s32 0, %v247
  %v249 = vrot.slane %v32, %v248
  %v252 = vunpack.c.l.b16 %v244
  %v253 = vunpack.c.l.b16 %v245
  %v254 = vpack.c.b16 %v253, %v252
  %vm256 = vcmask 130048
  %v258 = vsel %vm256, %v243, 0
  %260 = vmatprep.subr.bf16.mxu0 0
  %261 = vmatpush1.bf16.msra.mxu0 %v254
  %262 = vmatprep.subr.bf16.mxu0 0
  %263 = vmatpush1.bf16.msra.mxu0 0
  %264 = vmatprep.subr.bf16.mxu0 0
  %265 = vmatpush1.bf16.msra.mxu0 0
  %266 = vmatprep.subr.bf16.mxu0 0
  %267 = vmatpush1.bf16.msra.mxu0 0
  %268 = vmatprep.subr.bf16.mxu0 0
  %269 = vmatpush1.bf16.msra.mxu0 0
  %270 = vmatprep.subr.bf16.mxu0 0
  %271 = vmatpush1.bf16.msra.mxu0 0
  %272 = vmatprep.subr.bf16.mxu0 0
  %273 = vmatpush1.bf16.msra.mxu0 0
  %274 = vmatprep.subr.bf16.mxu0 0
  %275 = vmatpush1.bf16.msra.mxu0 0
  %276 = vmatprep.subr.bf16.mxu0 0
  %277 = vmatpush1.bf16.msra.mxu0 0
  %278 = vmatprep.subr.bf16.mxu0 0
  %279 = vmatpush1.bf16.msra.mxu0 0
  %280 = vmatprep.subr.bf16.mxu0 0
  %281 = vmatpush1.bf16.msra.mxu0 0
  %282 = vmatprep.subr.bf16.mxu0 0
  %283 = vmatpush1.bf16.msra.mxu0 0
  %284 = vmatprep.subr.bf16.mxu0 0
  %285 = vmatpush1.bf16.msra.mxu0 0
  %286 = vmatprep.subr.bf16.mxu0 0
  %287 = vmatpush1.bf16.msra.mxu0 0
  %288 = vmatprep.subr.bf16.mxu0 0
  %289 = vmatpush1.bf16.msra.mxu0 0
  %290 = vmatprep.subr.bf16.mxu0 0
  %291 = vmatpush1.bf16.msra.mxu0 0
  %292 = vmatprep.mubr.bf16.mxu0 0
  %293 = vmatmul.mubr.bf16.gmra.mrb[0].mxu0 %v258
  %v294 = vpop.f32.mrb[0].mxu0
  %v295 = vadd.f32 %v249, %v294
  %v296 = vpop.f32.mrb[0].mxu0
  %v297 = vpop.f32.mrb[0].mxu0
  %v298 = vadd.f32 %v249, %v297
  %v299 = vpop.f32.mrb[0].mxu0
  %300 = vdwg.mxu0
  %v301 = vsub.f32 0.0, %v295
  %v302 = vsub.f32 0.0, %v298
  %v303 = vmul.f32 %v301, 1.442695
  %v304 = vpow.pop %v303
  %v305 = vmul.f32 %v302, 1.442695
  %v306 = vpow.pop %v305
  %v307 = vadd.f32 %v304, 1.0
  %v308 = vadd.f32 %v306, 1.0
  %v309 = vrcp.pop %v307
  %v310 = vrcp.pop %v308
  %v311 = vmul.f32 %v295, %v309
  %v312 = vmul.f32 %v298, %v310
  %v313 = vpack.c.bf16 %v312, %v311
  %v314 = vld [vmem:[%s5] sm:$0xf]
  %v315 = vld [vmem:[%s5 + $0x4] sm:$0xf]
  %v316 = vld [vmem:[%s5 + $0x8] sm:$0xf]
  %v317 = vld [vmem:[%s5 + $0xc] sm:$0xf]
  %v318 = vld [vmem:[%s5 + $0x10] sm:$0xf]
  %v319 = vld [vmem:[%s5 + $0x14] sm:$0xf]
  %v320 = vld [vmem:[%s5 + $0x18] sm:$0xf]
  %v321 = vld [vmem:[%s5 + $0x1c] sm:$0xf]
  %v322 = vlaneseq
  %v323 = vshrl.u32 %v322, 7
  %v324 = vsub.s32 0, %v323
  %v325 = vrot.slane %v33, %v324
  %v334 = vunpack.c.l.b16 %v314
  %v335 = vunpack.c.l.b16 %v315
  %v336 = vunpack.c.l.b16 %v316
  %v337 = vunpack.c.l.b16 %v317
  %v338 = vunpack.c.l.b16 %v318
  %v339 = vunpack.c.l.b16 %v319
  %v340 = vunpack.c.l.b16 %v320
  %v341 = vunpack.c.l.b16 %v321
  %v342 = vpack.c.b16 %v335, %v334
  %v343 = vpack.c.b16 %v337, %v336
  %v344 = vpack.c.b16 %v339, %v338
  %v345 = vpack.c.b16 %v341, %v340
  %v351 = vsel %vm158, %v313, 0
  %353 = vmatprep.subr.bf16.mxu0 0
  %354 = vmatpush1.bf16.msra.mxu0 %v342
  %355 = vmatprep.subr.bf16.mxu0 0
  %356 = vmatpush1.bf16.msra.mxu0 %v343
  %357 = vmatprep.subr.bf16.mxu0 0
  %358 = vmatpush1.bf16.msra.mxu0 %v344
  %359 = vmatprep.subr.bf16.mxu0 0
  %360 = vmatpush1.bf16.msra.mxu0 %v345
  %361 = vmatprep.subr.bf16.mxu0 0
  %362 = vmatpush1.bf16.msra.mxu0 0
  %363 = vmatprep.subr.bf16.mxu0 0
  %364 = vmatpush1.bf16.msra.mxu0 0
  %365 = vmatprep.subr.bf16.mxu0 0
  %366 = vmatpush1.bf16.msra.mxu0 0
  %367 = vmatprep.subr.bf16.mxu0 0
  %368 = vmatpush1.bf16.msra.mxu0 0
  %369 = vmatprep.subr.bf16.mxu0 0
  %370 = vmatpush1.bf16.msra.mxu0 0
  %371 = vmatprep.subr.bf16.mxu0 0
  %372 = vmatpush1.bf16.msra.mxu0 0
  %373 = vmatprep.subr.bf16.mxu0 0
  %374 = vmatpush1.bf16.msra.mxu0 0
  %375 = vmatprep.subr.bf16.mxu0 0
  %376 = vmatpush1.bf16.msra.mxu0 0
  %377 = vmatprep.subr.bf16.mxu0 0
  %378 = vmatpush1.bf16.msra.mxu0 0
  %379 = vmatprep.subr.bf16.mxu0 0
  %380 = vmatpush1.bf16.msra.mxu0 0
  %381 = vmatprep.subr.bf16.mxu0 0
  %382 = vmatpush1.bf16.msra.mxu0 0
  %383 = vmatprep.subr.bf16.mxu0 0
  %384 = vmatpush1.bf16.msra.mxu0 0
  %385 = vmatprep.mubr.bf16.mxu0 0
  %386 = vmatmul.mubr.bf16.gmra.mrb[0].mxu0 %v351
  %v387 = vpop.f32.mrb[0].mxu0
  %v388 = vadd.f32 %v325, %v387
  %v389 = vpop.f32.mrb[0].mxu0
  %v390 = vpop.f32.mrb[0].mxu0
  %v391 = vadd.f32 %v325, %v390
  %v392 = vpop.f32.mrb[0].mxu0
  %393 = vdwg.mxu0
  %v394 = vsub.f32 0.0, %v388
  %v395 = vsub.f32 0.0, %v391
  %v396 = vmul.f32 %v394, 1.442695
  %v397 = vpow.pop %v396
  %v398 = vmul.f32 %v395, 1.442695
  %v399 = vpow.pop %v398
  %v400 = vadd.f32 %v397, 1.0
  %v401 = vadd.f32 %v399, 1.0
  %v402 = vrcp.pop %v400
  %v403 = vrcp.pop %v401
  %v404 = vmul.f32 %v388, %v402
  %v405 = vmul.f32 %v391, %v403
  %v406 = vpack.c.bf16 %v405, %v404
  %v407 = vld [vmem:[%s6] sm:$0xf]
  %v408 = vld [vmem:[%s6 + $0x4] sm:$0xf]
  %v409 = vld [vmem:[%s6 + $0x8] sm:$0xf]
  %v410 = vld [vmem:[%s6 + $0xc] sm:$0xf]
  %v411 = vld [vmem:[%s6 + $0x10] sm:$0xf]
  %v412 = vld [vmem:[%s6 + $0x14] sm:$0xf]
  %v413 = vld [vmem:[%s6 + $0x18] sm:$0xf]
  %v414 = vld [vmem:[%s6 + $0x1c] sm:$0xf]
  %v415 = vlaneseq
  %v416 = vshrl.u32 %v415, 7
  %v417 = vsub.s32 0, %v416
  %v418 = vrot.slane %v34, %v417
  %v427 = vunpack.c.l.b16 %v407
  %v428 = vunpack.c.l.b16 %v408
  %v429 = vunpack.c.l.b16 %v409
  %v430 = vunpack.c.l.b16 %v410
  %v431 = vunpack.c.l.b16 %v411
  %v432 = vunpack.c.l.b16 %v412
  %v433 = vunpack.c.l.b16 %v413
  %v434 = vunpack.c.l.b16 %v414
  %v435 = vpack.c.b16 %v428, %v427
  %v436 = vpack.c.b16 %v430, %v429
  %v437 = vpack.c.b16 %v432, %v431
  %v438 = vpack.c.b16 %v434, %v433
  %v444 = vsel %vm158, %v406, 0
  %446 = vmatprep.subr.bf16.mxu0 0
  %447 = vmatpush1.bf16.msra.mxu0 %v435
  %448 = vmatprep.subr.bf16.mxu0 0
  %449 = vmatpush1.bf16.msra.mxu0 %v436
  %450 = vmatprep.subr.bf16.mxu0 0
  %451 = vmatpush1.bf16.msra.mxu0 %v437
  %452 = vmatprep.subr.bf16.mxu0 0
  %453 = vmatpush1.bf16.msra.mxu0 %v438
  %454 = vmatprep.subr.bf16.mxu0 0
  %455 = vmatpush1.bf16.msra.mxu0 0
  %456 = vmatprep.subr.bf16.mxu0 0
  %457 = vmatpush1.bf16.msra.mxu0 0
  %458 = vmatprep.subr.bf16.mxu0 0
  %459 = vmatpush1.bf16.msra.mxu0 0
  %460 = vmatprep.subr.bf16.mxu0 0
  %461 = vmatpush1.bf16.msra.mxu0 0
  %462 = vmatprep.subr.bf16.mxu0 0
  %463 = vmatpush1.bf16.msra.mxu0 0
  %464 = vmatprep.subr.bf16.mxu0 0
  %465 = vmatpush1.bf16.msra.mxu0 0
  %466 = vmatprep.subr.bf16.mxu0 0
  %467 = vmatpush1.bf16.msra.mxu0 0
  %468 = vmatprep.subr.bf16.mxu0 0
  %469 = vmatpush1.bf16.msra.mxu0 0
  %470 = vmatprep.subr.bf16.mxu0 0
  %471 = vmatpush1.bf16.msra.mxu0 0
  %472 = vmatprep.subr.bf16.mxu0 0
  %473 = vmatpush1.bf16.msra.mxu0 0
  %474 = vmatprep.subr.bf16.mxu0 0
  %475 = vmatpush1.bf16.msra.mxu0 0
  %476 = vmatprep.subr.bf16.mxu0 0
  %477 = vmatpush1.bf16.msra.mxu0 0
  %478 = vmatprep.mubr.bf16.mxu0 0
  %479 = vmatmul.mubr.bf16.gmra.mrb[0].mxu0 %v444
  %v480 = vpop.f32.mrb[0].mxu0
  %v481 = vadd.f32 %v418, %v480
  %v482 = vpop.f32.mrb[0].mxu0
  %v483 = vpop.f32.mrb[0].mxu0
  %v484 = vadd.f32 %v418, %v483
  %v485 = vpop.f32.mrb[0].mxu0
  %486 = vdwg.mxu0
  %487 = vst.msk [vmem:[%s8] sm:$0xff] %vm64, %v481
  %488 = vst.msk [vmem:[%s8 + $0x8] sm:$0xff] %vm64, %v484
  %491 = vrot.lane.b32.xlu0 %v197, 32
  %v492 = vpop.permute.xlu0 %491
  %493 = vrot.lane.b32.xlu0 %v200, 32
  %v494 = vpop.permute.xlu0 %493
  %vm497 = vcmask 392448
  %498 = vst.msk [vmem:[%s8] sm:$0xff] %vm497, %v492
  %499 = vst.msk [vmem:[%s8 + $0x8] sm:$0xff] %vm497, %v494
  %vm500 = vcmask 523648
  %501 = vst.msk [vmem:[%s8] sm:$0xff] %vm500, %v492
  %502 = vst.msk [vmem:[%s8 + $0x8] sm:$0xff] %vm500, %v494
  // Predicated region
  $region34: #{vae_forward.1} parent=0 // pred_check
    _
  $region35: #{vae_forward.1} parent=0 // pred_check_branch
    %504 = sbr.rel (0) target = $region37
  $region36: #{vae_forward.1} parent=0 // pred_region
    _
  $region37: #{vae_forward.1} parent=0 // pred_fallthru
    _
  // Predicated region
  $region38: #{vae_forward.1} parent=0 // pred_check
    _
  $region39: #{vae_forward.1} parent=0 // pred_check_branch
    %506 = sbr.rel (0) target = $region41
  $region40: #{vae_forward.1} parent=0 // pred_region
    _
  $region41: #{vae_forward.1} parent=0 // pred_fallthru
    _

</llo_original>
